<compile_context>
chip_gen: v5e
topology: v5e:2x2
jax: 0.10.0
libtpu: 0.0.40
codegen_flags: <defaults>
</compile_context>

<pallas_src>
import collections

import jax
import jax.numpy as jnp
from jax import lax
from jax.experimental import pallas as pl
from jax.experimental.pallas import tpu as pltpu

# ---------------- synthetic "predict_net" configuration ----------------
N, C_IN, H, W = 2, 4, 16, 16        # external_input "data": (N, C_IN, H, W)
C_OUT, KH, KW = 8, 3, 3             # Conv op: 3x3, stride 1, pad 1 (SAME)
PAD = 1
LANES = W * C_OUT                   # 128 -> lane-dense packed output width
KDIM = KH * C_IN * W                # 192 -> fused matmul contraction dim
M = N * H                           # 32  -> matmul rows (one per (n, h))


def _conv_relu_kernel(a_ref, w_ref, b_ref, o_ref):
    """Pure matmul + bias + ReLU; all layout plumbing lives in the wrapper.

    a_ref : (M, KDIM)   = (32, 192)  bf16 im2col/Toeplitz activation slab
    w_ref : (KDIM, 128) = (192, 128) bf16 Toeplitz-packed weights (W pad baked in)
    b_ref : (1, 128)    f32 bias tiled over W
    o_ref : (M, 128)    f32 lane-dense packed output
    """
    acc = jnp.dot(a_ref[...], w_ref[...],
                  preferred_element_type=jnp.float32)        # one MXU call
    acc = acc + b_ref[...]                                   # full-width VPU add
    o_ref[...] = jnp.maximum(acc, 0.0).astype(o_ref.dtype)   # ReLU + unmasked vst


def _build_toeplitz_weight(weight_oihw):
    """OIHW (C_OUT, C_IN, KH, KW) -> bf16 (KH*C_IN*W, W*C_OUT) matmul slab.

    slab[kh*C_IN*W + ci*W + wu, wo*C_OUT + co] =
        weight[co, ci, kh, wu - wo + PAD]  if 0 <= wu - wo + PAD < KW else 0
    SAME padding along W is baked in (out-of-range taps become zero rows).
    One-time setup cost (init_net analogue).
    """
    w = jnp.asarray(weight_oihw, jnp.float32)
    wu = jnp.arange(W)[:, None]                 # input column
    wo = jnp.arange(W)[None, :]                 # output column
    kw = wu - wo + PAD
    valid = (kw >= 0) & (kw < KW)
    kw_safe = jnp.clip(kw, 0, KW - 1)
    w_t = jnp.transpose(w, (2, 1, 3, 0))        # (KH, C_IN, KW, C_OUT)
    taps = w_t[:, :, kw_safe, :]                # (KH, C_IN, W, W, C_OUT)
    taps = jnp.where(valid[None, None, :, :, None], taps, 0.0)
    return taps.reshape(KDIM, LANES).astype(jnp.bfloat16)


def _build_bias_slab(bias):
    # slab[0, wo*C_OUT + co] = bias[co]  (kept in f32 for the f32 accumulator)
    return jnp.tile(jnp.asarray(bias, jnp.float32), (W,)).reshape(1, LANES)


@jax.jit
def _run_predict_net(x_nchw, w_slab, b_slab):
    """Pallas implementation of the embedded caffe2 net (Conv3x3 + Relu)."""
    x = x_nchw.astype(jnp.float32)

    # Wrapper-side layout fold (fused by XLA, lane-dense input DMA):
    #   NCHW -> (N, H, C_IN*W) channel-packed rows,
    #   SAME H-padding via one zero row top/bottom,
    #   KH row-windows concatenated -> (N, H, KH*C_IN*W) -> (M, KDIM).
    xc = jnp.transpose(x, (0, 2, 1, 3)).reshape(N, H, C_IN * W)
    xp = jnp.pad(xc, ((0, 0), (PAD, PAD), (0, 0)))
    a = jnp.concatenate([xp[:, kh:kh + H, :] for kh in range(KH)], axis=-1)
    a = a.reshape(M, KDIM).astype(jnp.bfloat16)

    out_pk = pl.pallas_call(
        _conv_relu_kernel,
        out_shape=jax.ShapeDtypeStruct((M, LANES), jnp.float32),
        in_specs=[
            pl.BlockSpec(memory_space=pltpu.MemorySpace.VMEM),
            pl.BlockSpec(memory_space=pltpu.MemorySpace.VMEM),
            pl.BlockSpec(memory_space=pltpu.MemorySpace.VMEM),
        ],
        out_specs=pl.BlockSpec(memory_space=pltpu.MemorySpace.VMEM),
        # Harmless at this toy size; mandatory on v5e (16 MiB scoped default)
        # once the shapes are scaled up per the TODO.
        compiler_params=pltpu.CompilerParams(vmem_limit_bytes=32 * 1024 * 1024),
    )(a, w_slab, b_slab)

    # Unpack lane-dense (M, W*C_OUT) -> NCHW (layout plumbing, fused by jit).
    return jnp.transpose(out_pk.reshape(N, H, W, C_OUT), (0, 3, 1, 2))


class ProtobufModelPallas:
    """Mirrors ProtobufModel.forward: Dict[str, tensor] in, OrderedDict out."""

    def __init__(self, weight_oihw, bias):
        self.external_input = ["data"]
        self.external_output = ["conv_out"]
        # init_net analogue: one-time weight/bias repack into TPU-friendly slabs.
        self._w_slab = _build_toeplitz_weight(weight_oihw)
        self._b_slab = _build_bias_slab(bias)

    def forward(self, inputs_dict):
        assert all(inp in self.external_input for inp in inputs_dict)
        data = inputs_dict["data"]
        # TODO(synk): amortize the per-pallas_call floor by batching several
        # images per call (grow N / add a batch grid) when driven in a loop.
        conv_out = _run_predict_net(data, self._w_slab, self._b_slab)
        # TODO(synk): caffe2 RuntimeError catch-and-partial-results path has
        # no Pallas equivalent; kernels either compile and run or raise.
        return collections.OrderedDict([("conv_out", conv_out)])

    __call__ = forward


if __name__ == "__main__":
    key = jax.random.PRNGKey(0)
    k_x, k_w, k_b = jax.random.split(key, 3)

    x = jax.random.normal(k_x, (N, C_IN, H, W), dtype=jnp.float32)
    weight = jax.random.normal(k_w, (C_OUT, C_IN, KH, KW), dtype=jnp.float32) * 0.1
    bias = jax.random.normal(k_b, (C_OUT,), dtype=jnp.float32) * 0.1

    model = ProtobufModelPallas(weight, bias)
    outputs = model({"data": x})
    out = jax.block_until_ready(outputs["conv_out"])

    # Pure-JAX reference (Conv3x3 SAME + bias + ReLU, NCHW/OIHW), f32.
    ref = lax.conv_general_dilated(
        x, weight, window_strides=(1, 1), padding="SAME",
        dimension_numbers=("NCHW", "OIHW", "NCHW"))
    ref = jnp.maximum(ref + bias.reshape(1, C_OUT, 1, 1), 0.0)

    assert out.shape == (N, C_OUT, H, W)
    # bf16 MXU operands -> looser tolerance than the f32 version.
    assert jnp.allclose(out, ref, atol=3e-2, rtol=3e-2)
    print("KERNEL_OK")
</pallas_src>

<mosaic_0001>
module attributes {stable_mosaic.version = 11 : i64} {
  func.func @_conv_relu_kernel(%arg0: memref<32x192xbf16, #tpu.memory_space<vmem>>, %arg1: memref<192x128xbf16, #tpu.memory_space<vmem>>, %arg2: memref<1x128xf32, #tpu.memory_space<vmem>>, %arg3: memref<32x128xf32, #tpu.memory_space<vmem>>) attributes {dimension_semantics = [], scalar_prefetch = 0 : i64, scratch_operands = 0 : i64, tpu.core_type = #tpu.core_type<tc>} {
    %c0 = arith.constant 0 : index
    %c0_0 = arith.constant 0 : index
    %0 = vector.load %arg0[%c0, %c0_0] : memref<32x192xbf16, #tpu.memory_space<vmem>>, vector<32x192xbf16>
    %c0_1 = arith.constant 0 : index
    %c0_2 = arith.constant 0 : index
    %1 = vector.load %arg1[%c0_1, %c0_2] : memref<192x128xbf16, #tpu.memory_space<vmem>>, vector<192x128xbf16>
    %cst = arith.constant dense<0.000000e+00> : vector<32x128xf32>
    %2 = tpu.matmul %0, %1, %cst {dimension_numbers = #tpu.dot_dimension_numbers<[1], [0], [0], [1], [0, 0, 1, 1], [], []>} : vector<32x192xbf16>, vector<192x128xbf16>, vector<32x128xf32> -> vector<32x128xf32>
    %c0_3 = arith.constant 0 : index
    %c0_4 = arith.constant 0 : index
    %3 = vector.load %arg2[%c0_3, %c0_4] : memref<1x128xf32, #tpu.memory_space<vmem>>, vector<1x128xf32>
    %4 = vector.broadcast %3 : vector<1x128xf32> to vector<32x128xf32>
    %5 = arith.addf %2, %4 : vector<32x128xf32>
    %cst_5 = arith.constant 0.000000e+00 : f32
    %6 = vector.broadcast %cst_5 : f32 to vector<32x128xf32>
    %7 = arith.maximumf %5, %6 : vector<32x128xf32>
    %c0_6 = arith.constant 0 : index
    %c0_7 = arith.constant 0 : index
    %8 = vector.load %arg3[%c0_6, %c0_7] : memref<32x128xf32, #tpu.memory_space<vmem>>, vector<32x128xf32>
    tpu.vector_store %arg3[%c0_6, %c0_7], %7 {strides = array<i32>} : memref<32x128xf32, #tpu.memory_space<vmem>>, vector<32x128xf32>,
    return
  }
}

</mosaic_0001>

<llo_original>
// kernel: _run_predict_net.1
$region0: #{_run_predict_net.1}
  #allocation0 [shape = 'u32[]', space=smem, size = 0x4, offset = 0x4, fixed_abs, tag = 'smem constant byte address 0x4 - core index']
  #allocation1 [shape = 'u32[72,128]{1,0:T(1,128)}', space=vmem, size = 0x9000, scoped, tag = 'internal scratch']
  %s0 = inlined_call_operand.vmem [shape: bf16[32,192], index: 0, kind: input, shape index: {}]
  %s1 = inlined_call_operand.vmem [shape: bf16[192,128], index: 1, kind: input, shape index: {}]
  %s2 = inlined_call_operand.vmem [shape: f32[1,128], index: 2, kind: input, shape index: {}]
  %s3 = inlined_call_operand.vmem [shape: f32[32,128], index: 3, kind: output, shape index: {}]
  %s4 = sld [smem:[#allocation0]]
  $region22: #{_run_predict_net.1} parent=0
    _
  %s6 = ssub.s32 1, %s4
  %s7 = scalar_select 0, %s6, %s4
  // Predicated region
  $region2: #{_run_predict_net.1} parent=0 // pred_check
    _
  $region3: #{_run_predict_net.1} parent=0 // pred_check_branch
    %9 = sbr.rel (0) target = $region5
  $region4: #{_run_predict_net.1} parent=0 // pred_region
    _
  $region5: #{_run_predict_net.1} parent=0 // pred_fallthru
    _
  // Predicated region
  $region6: #{_run_predict_net.1} parent=0 // pred_check
    _
  $region7: #{_run_predict_net.1} parent=0 // pred_check_branch
    %11 = sbr.rel (0) target = $region9
  $region8: #{_run_predict_net.1} parent=0 // pred_region
    _
  $region9: #{_run_predict_net.1} parent=0 // pred_fallthru
    _
  // Predicated region
  $region10: #{_run_predict_net.1} parent=0 // pred_check
    _
  $region11: #{_run_predict_net.1} parent=0 // pred_check_branch
    %13 = sbr.rel (0) target = $region13
  $region12: #{_run_predict_net.1} parent=0 // pred_region
    _
  $region13: #{_run_predict_net.1} parent=0 // pred_fallthru
    _
  %v15 = vld [vmem:[%s0] sm:$0xff]
  %v16 = vld [vmem:[%s0 + $0x8] sm:$0xff]
  %v17 = vld [vmem:[%s0 + $0x10] sm:$0xff]
  %v18 = vld [vmem:[%s0 + $0x18] sm:$0xff]
  %v19 = vld [vmem:[%s1] sm:$0xf]
  %v20 = vld [vmem:[%s1 + $0x4] sm:$0xf]
  %v21 = vld [vmem:[%s1 + $0x8] sm:$0xf]
  %v22 = vld [vmem:[%s1 + $0xc] sm:$0xf]
  %v23 = vld [vmem:[%s1 + $0x10] sm:$0xf]
  %v24 = vld [vmem:[%s1 + $0x14] sm:$0xf]
  %v25 = vld [vmem:[%s1 + $0x18] sm:$0xf]
  %v26 = vld [vmem:[%s1 + $0x1c] sm:$0xf]
  %v27 = vld [vmem:[%s1 + $0x20] sm:$0xf]
  %v28 = vld [vmem:[%s1 + $0x24] sm:$0xf]
  %v29 = vld [vmem:[%s1 + $0x28] sm:$0xf]
  %v30 = vld [vmem:[%s1 + $0x2c] sm:$0xf]
  %v31 = vld [vmem:[%s1 + $0x30] sm:$0xf]
  %v32 = vld [vmem:[%s1 + $0x34] sm:$0xf]
  %v33 = vld [vmem:[%s1 + $0x38] sm:$0xf]
  %v34 = vld [vmem:[%s1 + $0x3c] sm:$0xf]
  %v35 = vld [vmem:[%s1 + $0x40] sm:$0xf]
  %v36 = vld [vmem:[%s1 + $0x44] sm:$0xf]
  %v37 = vld [vmem:[%s1 + $0x48] sm:$0xf]
  %v38 = vld [vmem:[%s1 + $0x4c] sm:$0xf]
  %v39 = vld [vmem:[%s1 + $0x50] sm:$0xf]
  %v40 = vld [vmem:[%s1 + $0x54] sm:$0xf]
  %v41 = vld [vmem:[%s1 + $0x58] sm:$0xf]
  %v42 = vld [vmem:[%s1 + $0x5c] sm:$0xf]
  %v43 = vld [vmem:[%s2] sm:$0x1]
  %v45 = vperm.slane %v43, 0
  %v51 = vunpack.c.l.b16 %v15
  %v52 = vunpack.c.h.b16 %v15
  %v53 = vunpack.c.l.b16 %v16
  %v54 = vunpack.c.h.b16 %v16
  %v55 = vunpack.c.l.b16 %v17
  %v56 = vunpack.c.h.b16 %v17
  %v57 = vunpack.c.l.b16 %v18
  %v58 = vunpack.c.h.b16 %v18
  %v59 = vpack.c.b16 %v53, %v51
  %v60 = vpack.c.b16 %v54, %v52
  %v61 = vpack.c.b16 %v57, %v55
  %v62 = vpack.c.b16 %v58, %v56
  %v89 = vunpack.c.l.b16 %v19
  %v90 = vunpack.c.l.b16 %v20
  %v91 = vunpack.c.l.b16 %v21
  %v92 = vunpack.c.l.b16 %v22
  %v93 = vunpack.c.l.b16 %v23
  %v94 = vunpack.c.l.b16 %v24
  %v95 = vunpack.c.l.b16 %v25
  %v96 = vunpack.c.l.b16 %v26
  %v97 = vunpack.c.l.b16 %v27
  %v98 = vunpack.c.l.b16 %v28
  %v99 = vunpack.c.l.b16 %v29
  %v100 = vunpack.c.l.b16 %v30
  %v101 = vunpack.c.l.b16 %v31
  %v102 = vunpack.c.l.b16 %v32
  %v103 = vunpack.c.l.b16 %v33
  %v104 = vunpack.c.l.b16 %v34
  %v105 = vunpack.c.l.b16 %v35
  %v106 = vunpack.c.l.b16 %v36
  %v107 = vunpack.c.l.b16 %v37
  %v108 = vunpack.c.l.b16 %v38
  %v109 = vunpack.c.l.b16 %v39
  %v110 = vunpack.c.l.b16 %v40
  %v111 = vunpack.c.l.b16 %v41
  %v112 = vunpack.c.l.b16 %v42
  %v113 = vpack.c.b16 %v90, %v89
  %v114 = vpack.c.b16 %v92, %v91
  %v115 = vpack.c.b16 %v94, %v93
  %v116 = vpack.c.b16 %v96, %v95
  %v117 = vpack.c.b16 %v98, %v97
  %v118 = vpack.c.b16 %v100, %v99
  %v119 = vpack.c.b16 %v102, %v101
  %v120 = vpack.c.b16 %v104, %v103
  %v121 = vpack.c.b16 %v106, %v105
  %v122 = vpack.c.b16 %v108, %v107
  %v123 = vpack.c.b16 %v110, %v109
  %v124 = vpack.c.b16 %v112, %v111
  %vm137 = vcmask 523264
  %v139 = vsel %vm137, %v60, 0
  %v142 = vsel %vm137, %v62, 0
  %144 = vmatpush.bf16.msra.mxu0 %v120
  %145 = vmatpush.bf16.msra.mxu0 %v119
  %146 = vmatpush.bf16.msra.mxu0 %v118
  %147 = vmatpush.bf16.msra.mxu0 %v117
  %148 = vmatpush.bf16.msra.mxu0 %v116
  %149 = vmatpush.bf16.msra.mxu0 %v115
  %150 = vmatpush.bf16.msra.mxu0 %v114
  %151 = vmatpush.bf16.msra.mxu0 %v113
  %152 = vmatmul.bf16.gmra.mxu0 %v59
  %v153 = vpop.f32.mrf.mxu0
  %v154 = vadd.f32 %v45, %v153
  %v155 = vpop.f32.mrf.mxu0
  %v156 = vadd.f32 %v45, %v155
  %157 = vmatmul.bf16.gmra.mxu0 %v61
  %v158 = vpop.f32.mrf.mxu0
  %v159 = vadd.f32 %v45, %v158
  %v160 = vpop.f32.mrf.mxu0
  %v161 = vadd.f32 %v45, %v160
  %162 = vdwg.mxu0
  %163 = vmatpush.bf16.msra.mxu0 0
  %164 = vmatpush.bf16.msra.mxu0 0
  %165 = vmatpush.bf16.msra.mxu0 0
  %166 = vmatpush.bf16.msra.mxu0 0
  %167 = vmatpush.bf16.msra.mxu0 %v124
  %168 = vmatpush.bf16.msra.mxu0 %v123
  %169 = vmatpush.bf16.msra.mxu0 %v122
  %170 = vmatpush.bf16.msra.mxu0 %v121
  %171 = vmatmul.bf16.gmra.mxu0 %v139
  %v172 = vpop.f32.mrf.mxu0
  %v173 = vadd.f32 %v154, %v172
  %v174 = vpop.f32.mrf.mxu0
  %v175 = vadd.f32 %v156, %v174
  %176 = vmatmul.bf16.gmra.mxu0 %v142
  %v177 = vpop.f32.mrf.mxu0
  %v178 = vadd.f32 %v159, %v177
  %v179 = vpop.f32.mrf.mxu0
  %v180 = vadd.f32 %v161, %v179
  %181 = vdwg.mxu0
  %v182 = vmax.f32 %v173, 0.0
  %v183 = vmax.f32 %v175, 0.0
  %v184 = vmax.f32 %v178, 0.0
  %v185 = vmax.f32 %v180, 0.0
  %186 = vst [vmem:[%s3] sm:$0xff] %v182
  %187 = vst [vmem:[%s3 + $0x8] sm:$0xff] %v183
  %188 = vst [vmem:[%s3 + $0x10] sm:$0xff] %v184
  %189 = vst [vmem:[%s3 + $0x18] sm:$0xff] %v185
  // Predicated region
  $region14: #{_run_predict_net.1} parent=0 // pred_check
    _
  $region15: #{_run_predict_net.1} parent=0 // pred_check_branch
    %191 = sbr.rel (0) target = $region17
  $region16: #{_run_predict_net.1} parent=0 // pred_region
    _
  $region17: #{_run_predict_net.1} parent=0 // pred_fallthru
    _
  // Predicated region
  $region18: #{_run_predict_net.1} parent=0 // pred_check
    _
  $region19: #{_run_predict_net.1} parent=0 // pred_check_branch
    %193 = sbr.rel (0) target = $region21
  $region20: #{_run_predict_net.1} parent=0 // pred_region
    _
  $region21: #{_run_predict_net.1} parent=0 // pred_fallthru
    _

</llo_original>
